<compile_context>
chip_gen: v7x
topology: tpu7x:2x2x1
jax: 0.10.0
libtpu: 0.0.40
codegen_flags: <defaults>
</compile_context>

<pallas_src>
import jax
import jax.numpy as jnp
import numpy as np
from jax.experimental import pallas as pl
from jax.experimental.pallas import tpu as pltpu


def _mubo_kernel(x_ref, wes_ref, wet_ref, w1s_ref, w1t_ref, b1_ref, w2t_ref,
                 b2_ref, out_ref):
    """x_ref: (2N, D_IN) rows = [x ; x_batch_shuffled]; all math in f32."""
    n = x_ref.shape[0] // 2

    x_all = x_ref[...]                                               # (2N, D_IN)

    # --- Encoders (tanh-linear stand-ins for the external var_net_s/var_net_t
    # encoders), fused in-kernel to avoid the HBM round-trip of zs/zt/zts. ----
    zs = jnp.tanh(jnp.dot(x_all[:n], wes_ref[...],
                          preferred_element_type=jnp.float32))       # (N, Dx)
    zy = jnp.tanh(jnp.dot(x_all, wet_ref[...],
                          preferred_element_type=jnp.float32))       # (2N, Dy) = [zt ; zt_shuffle]

    # --- Critic layer 1: cat(zs, y) @ W1 == zs @ W1s + y @ W1t. -------------
    # zs branch computed once (shared by both critic calls); the zt/zt_shuffle
    # branch is a single batched matmul over 2N rows.
    hs = jnp.dot(zs, w1s_ref[...],
                 preferred_element_type=jnp.float32) + b1_ref[...]   # (N, H)
    ht = jnp.dot(zy, w1t_ref[...],
                 preferred_element_type=jnp.float32)                 # (2N, H)
    h = jnp.maximum(ht.reshape(2, n, ht.shape[-1]) + hs, 0.0)        # (2, N, H)
    # TODO(synk): nn.Dropout treated as identity (eval-mode semantics).

    # --- Critic layer 2: single-output-lane matmul -> VPU mul + lane reduce.
    logit = jnp.sum(h * w2t_ref[...], axis=-1, keepdims=True) + b2_ref[0]
    f = jax.nn.sigmoid(logit)                                        # (2, N, 1)

    # --- mubo + regularizer reductions. -------------------------------------
    mubo = f[0] - f[1]                                               # (N, 1)
    mubo_neg = jnp.minimum(mubo, 0.0)            # == mubo * (mubo < 0)
    inv_n = 1.0 / float(mubo.shape[0] * mubo.shape[1])
    reg = jnp.sum(mubo_neg * mubo_neg) * inv_n
    out_ref[0, 0] = jnp.sum(mubo) * inv_n + reg


@jax.jit
def calculate_mubo_pallas(x, x_shuffle, we_s, we_t, w1, b1, w2, b2):
    """x, x_shuffle: (N, D_IN) f32 (x_shuffle = batch-permuted x);
    we_s: (D_IN, Dx), we_t: (D_IN, Dy): encoder stand-in weights;
    w1: (Dx+Dy, H), b1: (H,), w2: (H, 1), b2: (1,): critic params.
    Returns scalar f32: mubo.mean() + reg."""
    dx = we_s.shape[-1]
    # Concat folded into split weights: cat(zs, zt) @ W1 == zs@W1[:Dx] + zt@W1[Dx:].
    # (Assumes w1 rows are ordered [zs-features, zt-features].)
    w1s = w1[:dx, :]
    w1t = w1[dx:, :]
    # Stack x and the shuffled x so the t-branch runs as one batched matmul.
    x_all = jnp.concatenate([x, x_shuffle], axis=0)
    out = pl.pallas_call(
        _mubo_kernel,
        out_shape=jax.ShapeDtypeStruct((1, 1), jnp.float32),
        in_specs=[pl.BlockSpec(memory_space=pltpu.MemorySpace.VMEM)] * 7
        + [pl.BlockSpec(memory_space=pltpu.MemorySpace.SMEM)],       # b2 scalar
        out_specs=pl.BlockSpec(memory_space=pltpu.MemorySpace.SMEM),
    )(x_all, we_s, we_t, w1s, w1t,
      b1.reshape(1, -1), w2.reshape(1, -1), b2)
    return out[0, 0]


def _reference(zs, zt, zt_shuffle, w1, b1, w2, b2):
    """Pure-JAX reference mirroring the PyTorch math (dropout = identity)."""
    def critic(x, y):
        cat = jnp.concatenate([x, y], axis=-1)
        h = jnp.maximum(cat @ w1 + b1, 0.0)
        return jax.nn.sigmoid(h @ w2 + b2)
    f_st = critic(zs, zt)
    f_s_t = critic(zs, zt_shuffle)
    mubo = f_st - f_s_t
    pos_mask = jnp.where(mubo < 0.0, 1.0, 0.0)
    reg = jnp.mean((mubo * pos_mask) ** 2)
    return jnp.mean(mubo) + reg


if __name__ == "__main__":
    # Small, deterministic shapes.
    B, L, D_IN = 4, 8, 8          # x_his: (B, L, D_IN)
    X_DIM, Y_DIM = 16, 16         # latent dims of the two encoders
    CAT = X_DIM + Y_DIM           # 32
    HID = CAT // 4                # 8  (cat_dim // 4 in CriticFunc)

    key = jax.random.PRNGKey(0)
    ks = jax.random.split(key, 8)

    x_his = jax.random.normal(ks[0], (B, L, D_IN), dtype=jnp.float32)

    # Deterministic stand-ins for the external var_net_s / var_net_t encoders.
    we_s = jax.random.normal(ks[1], (D_IN, X_DIM), dtype=jnp.float32) * 0.3
    we_t = jax.random.normal(ks[2], (D_IN, Y_DIM), dtype=jnp.float32) * 0.3

    # idx = torch.randperm(B); batch shuffle applied to x before the kernel.
    idx = jax.random.permutation(ks[3], B)

    # Critic parameters (deterministic init; shapes from CriticFunc.__init__).
    w1 = jax.random.normal(ks[4], (CAT, HID), dtype=jnp.float32) * (1.0 / np.sqrt(CAT))
    b1 = jax.random.normal(ks[5], (HID,), dtype=jnp.float32) * 0.05
    w2 = jax.random.normal(ks[6], (HID, 1), dtype=jnp.float32) * (1.0 / np.sqrt(HID))
    b2 = jax.random.normal(ks[7], (1,), dtype=jnp.float32) * 0.05

    # Kernel path: encoders fused in-kernel; only x / x_shuffled go to HBM.
    x = x_his.reshape(B * L, D_IN)
    x_shuf = x_his[idx].reshape(B * L, D_IN)
    out = calculate_mubo_pallas(x, x_shuf, we_s, we_t, w1, b1, w2, b2)
    out = jax.block_until_ready(out)

    # Pure-JAX reference (encoders + critic, mirroring the PyTorch math).
    zs = jnp.tanh(x_his @ we_s).reshape(B * L, X_DIM)
    zt = jnp.tanh(x_his @ we_t).reshape(B * L, Y_DIM)
    zt_shuf = jnp.tanh(x_his @ we_t)[idx].reshape(B * L, Y_DIM)
    ref = jax.block_until_ready(_reference(zs, zt, zt_shuf, w1, b1, w2, b2))

    # Tolerance allows for the MXU's multi-pass f32 emulation in the fused
    # encoder matmuls vs XLA's matmul path in the reference.
    assert np.allclose(np.asarray(out), np.asarray(ref), rtol=1e-4, atol=1e-4), (out, ref)

    print("KERNEL_OK")
</pallas_src>

<mosaic_0001>
module attributes {stable_mosaic.version = 11 : i64} {
  func.func @_mubo_kernel(%arg0: memref<64x8xf32, #tpu.memory_space<vmem>>, %arg1: memref<8x16xf32, #tpu.memory_space<vmem>>, %arg2: memref<8x16xf32, #tpu.memory_space<vmem>>, %arg3: memref<16x8xf32, #tpu.memory_space<vmem>>, %arg4: memref<16x8xf32, #tpu.memory_space<vmem>>, %arg5: memref<1x8xf32, #tpu.memory_space<vmem>>, %arg6: memref<1x8xf32, #tpu.memory_space<vmem>>, %arg7: memref<1xf32, #tpu.memory_space<smem>>, %arg8: memref<1x1xf32, #tpu.memory_space<smem>>) attributes {dimension_semantics = [], scalar_prefetch = 0 : i64, scratch_operands = 0 : i64, tpu.core_type = #tpu.core_type<tc>} {
    %c0 = arith.constant 0 : index
    %c0_0 = arith.constant 0 : index
    %0 = vector.load %arg0[%c0, %c0_0] : memref<64x8xf32, #tpu.memory_space<vmem>>, vector<64x8xf32>
    %1 = vector.extract_strided_slice %0 {offsets = [0, 0], sizes = [32, 8], strides = [1, 1]} : vector<64x8xf32> to vector<32x8xf32>
    %c0_1 = arith.constant 0 : index
    %c0_2 = arith.constant 0 : index
    %2 = vector.load %arg1[%c0_1, %c0_2] : memref<8x16xf32, #tpu.memory_space<vmem>>, vector<8x16xf32>
    %cst = arith.constant dense<0.000000e+00> : vector<32x16xf32>
    %3 = tpu.matmul %1, %2, %cst {dimension_numbers = #tpu.dot_dimension_numbers<[1], [0], [0], [1], [0, 0, 1, 1], [], []>} : vector<32x8xf32>, vector<8x16xf32>, vector<32x16xf32> -> vector<32x16xf32>
    %4 = math.tanh %3 : vector<32x16xf32>
    %c0_3 = arith.constant 0 : index
    %c0_4 = arith.constant 0 : index
    %5 = vector.load %arg2[%c0_3, %c0_4] : memref<8x16xf32, #tpu.memory_space<vmem>>, vector<8x16xf32>
    %cst_5 = arith.constant dense<0.000000e+00> : vector<64x16xf32>
    %6 = tpu.matmul %0, %5, %cst_5 {dimension_numbers = #tpu.dot_dimension_numbers<[1], [0], [0], [1], [0, 0, 1, 1], [], []>} : vector<64x8xf32>, vector<8x16xf32>, vector<64x16xf32> -> vector<64x16xf32>
    %7 = math.tanh %6 : vector<64x16xf32>
    %c0_6 = arith.constant 0 : index
    %c0_7 = arith.constant 0 : index
    %8 = vector.load %arg3[%c0_6, %c0_7] : memref<16x8xf32, #tpu.memory_space<vmem>>, vector<16x8xf32>
    %cst_8 = arith.constant dense<0.000000e+00> : vector<32x8xf32>
    %9 = tpu.matmul %4, %8, %cst_8 {dimension_numbers = #tpu.dot_dimension_numbers<[1], [0], [0], [1], [0, 0, 1, 1], [], []>} : vector<32x16xf32>, vector<16x8xf32>, vector<32x8xf32> -> vector<32x8xf32>
    %c0_9 = arith.constant 0 : index
    %c0_10 = arith.constant 0 : index
    %10 = vector.load %arg5[%c0_9, %c0_10] : memref<1x8xf32, #tpu.memory_space<vmem>>, vector<1x8xf32>
    %11 = vector.broadcast %10 : vector<1x8xf32> to vector<32x8xf32>
    %12 = arith.addf %9, %11 : vector<32x8xf32>
    %c0_11 = arith.constant 0 : index
    %c0_12 = arith.constant 0 : index
    %13 = vector.load %arg4[%c0_11, %c0_12] : memref<16x8xf32, #tpu.memory_space<vmem>>, vector<16x8xf32>
    %cst_13 = arith.constant dense<0.000000e+00> : vector<64x8xf32>
    %14 = tpu.matmul %7, %13, %cst_13 {dimension_numbers = #tpu.dot_dimension_numbers<[1], [0], [0], [1], [0, 0, 1, 1], [], []>} : vector<64x16xf32>, vector<16x8xf32>, vector<64x8xf32> -> vector<64x8xf32>
    %15 = vector.shape_cast %14 : vector<64x8xf32> to vector<2x32x8xf32>
    %16 = vector.shape_cast %12 : vector<32x8xf32> to vector<1x32x8xf32>
    %17 = vector.broadcast %16 : vector<1x32x8xf32> to vector<2x32x8xf32>
    %18 = arith.addf %15, %17 : vector<2x32x8xf32>
    %cst_14 = arith.constant 0.000000e+00 : f32
    %19 = vector.broadcast %cst_14 : f32 to vector<2x32x8xf32>
    %20 = arith.maximumf %18, %19 : vector<2x32x8xf32>
    %c0_15 = arith.constant 0 : index
    %c0_16 = arith.constant 0 : index
    %21 = vector.load %arg6[%c0_15, %c0_16] : memref<1x8xf32, #tpu.memory_space<vmem>>, vector<1x8xf32>
    %22 = vector.shape_cast %21 : vector<1x8xf32> to vector<1x1x8xf32>
    %23 = vector.broadcast %22 : vector<1x1x8xf32> to vector<2x32x8xf32>
    %24 = arith.mulf %20, %23 : vector<2x32x8xf32>
    %cst_17 = arith.constant dense<0.000000e+00> : vector<2x32xf32>
    %25 = vector.multi_reduction <add>, %24, %cst_17 [2] : vector<2x32x8xf32> to vector<2x32xf32>
    %26 = vector.shape_cast %25 : vector<2x32xf32> to vector<2x32x1xf32>
    %c0_18 = arith.constant 0 : index
    %27 = memref.load %arg7[%c0_18] : memref<1xf32, #tpu.memory_space<smem>>
    %28 = vector.broadcast %27 : f32 to vector<2x32x1xf32>
    %29 = arith.addf %26, %28 : vector<2x32x1xf32>
    %30 = arith.negf %29 : vector<2x32x1xf32>
    %31 = math.exp %30 : vector<2x32x1xf32>
    %cst_19 = arith.constant 1.000000e+00 : f32
    %32 = vector.broadcast %cst_19 : f32 to vector<2x32x1xf32>
    %33 = arith.addf %32, %31 : vector<2x32x1xf32>
    %34 = arith.divf %32, %33 : vector<2x32x1xf32>
    %35 = vector.extract_strided_slice %34 {offsets = [0, 0, 0], sizes = [1, 32, 1], strides = [1, 1, 1]} : vector<2x32x1xf32> to vector<1x32x1xf32>
    %36 = vector.shape_cast %35 : vector<1x32x1xf32> to vector<32x1xf32>
    %37 = vector.extract_strided_slice %34 {offsets = [1, 0, 0], sizes = [1, 32, 1], strides = [1, 1, 1]} : vector<2x32x1xf32> to vector<1x32x1xf32>
    %38 = vector.shape_cast %37 : vector<1x32x1xf32> to vector<32x1xf32>
    %39 = arith.subf %36, %38 : vector<32x1xf32>
    %cst_20 = arith.constant 0.000000e+00 : f32
    %40 = vector.broadcast %cst_20 : f32 to vector<32x1xf32>
    %41 = arith.minimumf %39, %40 : vector<32x1xf32>
    %42 = arith.mulf %41, %41 : vector<32x1xf32>
    %43 = vector.shape_cast %42 : vector<32x1xf32> to vector<1x32x1xf32>
    %cst_21 = arith.constant dense<0.000000e+00> : vector<1xf32>
    %44 = vector.multi_reduction <add>, %43, %cst_21 [1, 2] : vector<1x32x1xf32> to vector<1xf32>
    %45 = vector.shape_cast %44 : vector<1xf32> to vector<1x1x1xf32>
    %46 = vector.extract %45[0, 0, 0] : f32 from vector<1x1x1xf32>
    %cst_22 = arith.constant 3.125000e-02 : f32
    %47 = arith.mulf %46, %cst_22 : f32
    %48 = vector.shape_cast %39 : vector<32x1xf32> to vector<1x32x1xf32>
    %cst_23 = arith.constant dense<0.000000e+00> : vector<1xf32>
    %49 = vector.multi_reduction <add>, %48, %cst_23 [1, 2] : vector<1x32x1xf32> to vector<1xf32>
    %50 = vector.shape_cast %49 : vector<1xf32> to vector<1x1x1xf32>
    %51 = vector.extract %50[0, 0, 0] : f32 from vector<1x1x1xf32>
    %cst_24 = arith.constant 3.125000e-02 : f32
    %52 = arith.mulf %51, %cst_24 : f32
    %53 = arith.addf %52, %47 : f32
    %c0_25 = arith.constant 0 : index
    %c0_26 = arith.constant 0 : index
    %54 = memref.load %arg8[%c0_25, %c0_26] : memref<1x1xf32, #tpu.memory_space<smem>>
    memref.store %53, %arg8[%c0_25, %c0_26] : memref<1x1xf32, #tpu.memory_space<smem>>
    return
  }
}

</mosaic_0001>

<llo_original>
// kernel: calculate_mubo_pallas.1
$region0: #{calculate_mubo_pallas.1}
  #allocation0 [shape = 'u32[]', space=smem, size = 0x4, offset = 0x4, fixed_abs, tag = 'smem constant byte address 0x4 - core index']
  #allocation1 [shape = 'u32[144,128]{1,0:T(1,128)}', space=vmem, size = 0x12000, scoped, tag = 'internal scratch']
  #allocation2 [shape = 'f32[1]{0:T(128)S(6)}', space=smem, size = 0x200, scoped, tag = 'scoped memory for calculate_mubo_pallas.1']
  %s0 = inlined_call_operand.vmem [shape: f32[64,8], index: 0, kind: input, shape index: {}]
  %s1 = inlined_call_operand.vmem [shape: f32[8,16], index: 1, kind: input, shape index: {}]
  %s2 = inlined_call_operand.vmem [shape: f32[8,16], index: 2, kind: input, shape index: {}]
  %s3 = inlined_call_operand.vmem [shape: f32[16,8], index: 3, kind: input, shape index: {}]
  %s4 = inlined_call_operand.vmem [shape: f32[16,8], index: 4, kind: input, shape index: {}]
  %s5 = inlined_call_operand.vmem [shape: f32[1,8], index: 5, kind: input, shape index: {}]
  %s6 = inlined_call_operand.vmem [shape: f32[1,8], index: 6, kind: input, shape index: {}]
  %s7 = inlined_call_operand.<no memory space> [shape: f32[1], index: 7, kind: input, shape index: {}]
  %s8 = inlined_call_operand.hbm [shape: f32[1,1], index: 8, kind: output, shape index: {}]
  %s9 = sld [smem:[#allocation0]]
  $region42: #{calculate_mubo_pallas.1} parent=0
    _
  %s11 = ssub.s32 1, %s9
  %s12 = scalar_select 0, %s11, %s9
  %13 = sst [smem:[#allocation2]] %s7
  $region1: #{calculate_mubo_pallas.1} parent=0
    #allocation3 [shape = 'u8[512]{0}', space=smem, size = 0x200, scoped, tag = 'output window, operand 0, single buffered']
    #allocation4 [shape = 's32[1]{0}', space=sflag, size = 0x4, scoped, tag = 'scoped memory for calculate_mubo_pallas.1']
    %14 = vsyncpa [#allocation4], 0
    // Predicated region
    $region2: #{calculate_mubo_pallas.1} parent=1 // pred_check
      _
    $region3: #{calculate_mubo_pallas.1} parent=1 // pred_check_branch
      %16 = sbr.rel (0) target = $region5
    $region4: #{calculate_mubo_pallas.1} parent=1 // pred_region
      _
    $region5: #{calculate_mubo_pallas.1} parent=1 // pred_fallthru
      _
    // Predicated region
    $region6: #{calculate_mubo_pallas.1} parent=1 // pred_check
      _
    $region7: #{calculate_mubo_pallas.1} parent=1 // pred_check_branch
      %18 = sbr.rel (0) target = $region9
    $region8: #{calculate_mubo_pallas.1} parent=1 // pred_region
      _
    $region9: #{calculate_mubo_pallas.1} parent=1 // pred_fallthru
      _
    // Predicated region
    $region10: #{calculate_mubo_pallas.1} parent=1 // pred_check
      _
    $region11: #{calculate_mubo_pallas.1} parent=1 // pred_check_branch
      %20 = sbr.rel (0) target = $region13
    $region12: #{calculate_mubo_pallas.1} parent=1 // pred_region
      _
    $region13: #{calculate_mubo_pallas.1} parent=1 // pred_fallthru
      _
    // Predicated region
    $region14: #{calculate_mubo_pallas.1} parent=1 // pred_check
      _
    $region15: #{calculate_mubo_pallas.1} parent=1 // pred_check_branch
      %22 = sbr.rel (0) target = $region17
    $region16: #{calculate_mubo_pallas.1} parent=1 // pred_region
      _
    $region17: #{calculate_mubo_pallas.1} parent=1 // pred_fallthru
      _
    // Predicated region
    $region18: #{calculate_mubo_pallas.1} parent=1 // pred_check
      _
    $region19: #{calculate_mubo_pallas.1} parent=1 // pred_check_branch
      %24 = sbr.rel (0) target = $region21
    $region20: #{calculate_mubo_pallas.1} parent=1 // pred_region
      _
    $region21: #{calculate_mubo_pallas.1} parent=1 // pred_fallthru
      _
    // Predicated region
    $region22: #{calculate_mubo_pallas.1} parent=1 // pred_check
      _
    $region23: #{calculate_mubo_pallas.1} parent=1 // pred_check_branch
      %26 = sbr.rel (0) target = $region25
    $region24: #{calculate_mubo_pallas.1} parent=1 // pred_region
      _
    $region25: #{calculate_mubo_pallas.1} parent=1 // pred_fallthru
      _
    // Predicated region
    $region26: #{calculate_mubo_pallas.1} parent=1 // pred_check
      _
    $region27: #{calculate_mubo_pallas.1} parent=1 // pred_check_branch
      %28 = sbr.rel (0) target = $region29
    $region28: #{calculate_mubo_pallas.1} parent=1 // pred_region
      _
    $region29: #{calculate_mubo_pallas.1} parent=1 // pred_fallthru
      _
    // Predicated region
    $region30: #{calculate_mubo_pallas.1} parent=1 // pred_check
      _
    $region31: #{calculate_mubo_pallas.1} parent=1 // pred_check_branch
      %30 = sbr.rel (0) target = $region33
    $region32: #{calculate_mubo_pallas.1} parent=1 // pred_region
      _
    $region33: #{calculate_mubo_pallas.1} parent=1 // pred_fallthru
      _
    %v31 = vld [vmem:[%s0] sm:$0xff]
    %v32 = vld [vmem:[%s0 + $0x8] sm:$0xff]
    %v33 = vld [vmem:[%s0 + $0x10] sm:$0xff]
    %v34 = vld [vmem:[%s0 + $0x18] sm:$0xff]
    %v35 = vld [vmem:[%s0 + $0x20] sm:$0xff]
    %v36 = vld [vmem:[%s0 + $0x28] sm:$0xff]
    %v37 = vld [vmem:[%s0 + $0x30] sm:$0xff]
    %v38 = vld [vmem:[%s0 + $0x38] sm:$0xff]
    %v39 = vld [vmem:[%s1] sm:$0xff]
    %vm40 = vcmask 64512
    %v42 = vsel %vm40, %v31, 0
    %v45 = vsel %vm40, %v32, 0
    %v48 = vsel %vm40, %v33, 0
    %v51 = vsel %vm40, %v34, 0
    %53 = vmatprep.subr.mxu0 0.0
    %54 = vmatpush1.msra.mxu0 %v39
    %55 = vmatprep.subr.mxu0 0.0
    %56 = vmatpush1.msra.mxu0 0.0
    %57 = vmatprep.subr.mxu0 0.0
    %58 = vmatpush1.msra.mxu0 0.0
    %59 = vmatprep.subr.mxu0 0.0
    %60 = vmatpush1.msra.mxu0 0.0
    %61 = vmatprep.subr.mxu0 0.0
    %62 = vmatpush1.msra.mxu0 0.0
    %63 = vmatprep.subr.mxu0 0.0
    %64 = vmatpush1.msra.mxu0 0.0
    %65 = vmatprep.subr.mxu0 0.0
    %66 = vmatpush1.msra.mxu0 0.0
    %67 = vmatprep.subr.mxu0 0.0
    %68 = vmatpush1.msra.mxu0 0.0
    %69 = vmatprep.subr.mxu0 0.0
    %70 = vmatpush1.msra.mxu0 0.0
    %71 = vmatprep.subr.mxu0 0.0
    %72 = vmatpush1.msra.mxu0 0.0
    %73 = vmatprep.subr.mxu0 0.0
    %74 = vmatpush1.msra.mxu0 0.0
    %75 = vmatprep.subr.mxu0 0.0
    %76 = vmatpush1.msra.mxu0 0.0
    %77 = vmatprep.subr.mxu0 0.0
    %78 = vmatpush1.msra.mxu0 0.0
    %79 = vmatprep.subr.mxu0 0.0
    %80 = vmatpush1.msra.mxu0 0.0
    %81 = vmatprep.subr.mxu0 0.0
    %82 = vmatpush1.msra.mxu0 0.0
    %83 = vmatprep.subr.mxu0 0.0
    %84 = vmatpush1.msra.mxu0 0.0
    %85 = vmatprep.subr.mxu0 0.0
    %86 = vmatpush1.msra.mxu0 0.0
    %87 = vmatprep.subr.mxu0 0.0
    %88 = vmatpush1.msra.mxu0 0.0
    %89 = vmatprep.subr.mxu0 0.0
    %90 = vmatpush1.msra.mxu0 0.0
    %91 = vmatprep.subr.mxu0 0.0
    %92 = vmatpush1.msra.mxu0 0.0
    %93 = vmatprep.subr.mxu0 0.0
    %94 = vmatpush1.msra.mxu0 0.0
    %95 = vmatprep.subr.mxu0 0.0
    %96 = vmatpush1.msra.mxu0 0.0
    %97 = vmatprep.subr.mxu0 0.0
    %98 = vmatpush1.msra.mxu0 0.0
    %99 = vmatprep.subr.mxu0 0.0
    %100 = vmatpush1.msra.mxu0 0.0
    %101 = vmatprep.subr.mxu0 0.0
    %102 = vmatpush1.msra.mxu0 0.0
    %103 = vmatprep.subr.mxu0 0.0
    %104 = vmatpush1.msra.mxu0 0.0
    %105 = vmatprep.subr.mxu0 0.0
    %106 = vmatpush1.msra.mxu0 0.0
    %107 = vmatprep.subr.mxu0 0.0
    %108 = vmatpush1.msra.mxu0 0.0
    %109 = vmatprep.subr.mxu0 0.0
    %110 = vmatpush1.msra.mxu0 0.0
    %111 = vmatprep.subr.mxu0 0.0
    %112 = vmatpush1.msra.mxu0 0.0
    %113 = vmatprep.subr.mxu0 0.0
    %114 = vmatpush1.msra.mxu0 0.0
    %115 = vmatprep.subr.mxu0 0.0
    %116 = vmatpush1.msra.mxu0 0.0
    %117 = vmatprep.mubr.f32.mxu0 0.0
    %118 = vmatmul.mubr.f32.gmra.mrb[0].mxu0 %v42
    %v119 = vpop.f32.mrb[0].mxu0
    %v120 = vadd.f32 0.0, %v119
    %v121 = vpop.f32.mrb[0].mxu0
    %122 = vmatprep.mubr.f32.mxu0 0.0
    %123 = vmatmul.mubr.f32.gmra.mrb[0].mxu0 %v45
    %v124 = vpop.f32.mrb[0].mxu0
    %v125 = vadd.f32 0.0, %v124
    %v126 = vpop.f32.mrb[0].mxu0
    %127 = vmatprep.mubr.f32.mxu0 0.0
    %128 = vmatmul.mubr.f32.gmra.mrb[0].mxu0 %v48
    %v129 = vpop.f32.mrb[0].mxu0
    %v130 = vadd.f32 0.0, %v129
    %v131 = vpop.f32.mrb[0].mxu0
    %132 = vmatprep.mubr.f32.mxu0 0.0
    %133 = vmatmul.mubr.f32.gmra.mrb[0].mxu0 %v51
    %v134 = vpop.f32.mrb[0].mxu0
    %v135 = vadd.f32 0.0, %v134
    %v136 = vpop.f32.mrb[0].mxu0
    %137 = vdwg.mxu0
    %v138 = vtanh.pop %v120
    %v139 = vtanh.pop %v125
    %v140 = vtanh.pop %v130
    %v141 = vtanh.pop %v135
    %v142 = vld [vmem:[%s2] sm:$0xff]
    %v144 = vsel %vm40, %v35, 0
    %v147 = vsel %vm40, %v36, 0
    %v150 = vsel %vm40, %v37, 0
    %v153 = vsel %vm40, %v38, 0
    %155 = vmatprep.subr.mxu0 0.0
    %156 = vmatpush1.msra.mxu0 %v142
    %157 = vmatprep.subr.mxu0 0.0
    %158 = vmatpush1.msra.mxu0 0.0
    %159 = vmatprep.subr.mxu0 0.0
    %160 = vmatpush1.msra.mxu0 0.0
    %161 = vmatprep.subr.mxu0 0.0
    %162 = vmatpush1.msra.mxu0 0.0
    %163 = vmatprep.subr.mxu0 0.0
    %164 = vmatpush1.msra.mxu0 0.0
    %165 = vmatprep.subr.mxu0 0.0
    %166 = vmatpush1.msra.mxu0 0.0
    %167 = vmatprep.subr.mxu0 0.0
    %168 = vmatpush1.msra.mxu0 0.0
    %169 = vmatprep.subr.mxu0 0.0
    %170 = vmatpush1.msra.mxu0 0.0
    %171 = vmatprep.subr.mxu0 0.0
    %172 = vmatpush1.msra.mxu0 0.0
    %173 = vmatprep.subr.mxu0 0.0
    %174 = vmatpush1.msra.mxu0 0.0
    %175 = vmatprep.subr.mxu0 0.0
    %176 = vmatpush1.msra.mxu0 0.0
    %177 = vmatprep.subr.mxu0 0.0
    %178 = vmatpush1.msra.mxu0 0.0
    %179 = vmatprep.subr.mxu0 0.0
    %180 = vmatpush1.msra.mxu0 0.0
    %181 = vmatprep.subr.mxu0 0.0
    %182 = vmatpush1.msra.mxu0 0.0
    %183 = vmatprep.subr.mxu0 0.0
    %184 = vmatpush1.msra.mxu0 0.0
    %185 = vmatprep.subr.mxu0 0.0
    %186 = vmatpush1.msra.mxu0 0.0
    %187 = vmatprep.subr.mxu0 0.0
    %188 = vmatpush1.msra.mxu0 0.0
    %189 = vmatprep.subr.mxu0 0.0
    %190 = vmatpush1.msra.mxu0 0.0
    %191 = vmatprep.subr.mxu0 0.0
    %192 = vmatpush1.msra.mxu0 0.0
    %193 = vmatprep.subr.mxu0 0.0
    %194 = vmatpush1.msra.mxu0 0.0
    %195 = vmatprep.subr.mxu0 0.0
    %196 = vmatpush1.msra.mxu0 0.0
    %197 = vmatprep.subr.mxu0 0.0
    %198 = vmatpush1.msra.mxu0 0.0
    %199 = vmatprep.subr.mxu0 0.0
    %200 = vmatpush1.msra.mxu0 0.0
    %201 = vmatprep.subr.mxu0 0.0
    %202 = vmatpush1.msra.mxu0 0.0
    %203 = vmatprep.subr.mxu0 0.0
    %204 = vmatpush1.msra.mxu0 0.0
    %205 = vmatprep.subr.mxu0 0.0
    %206 = vmatpush1.msra.mxu0 0.0
    %207 = vmatprep.subr.mxu0 0.0
    %208 = vmatpush1.msra.mxu0 0.0
    %209 = vmatprep.subr.mxu0 0.0
    %210 = vmatpush1.msra.mxu0 0.0
    %211 = vmatprep.subr.mxu0 0.0
    %212 = vmatpush1.msra.mxu0 0.0
    %213 = vmatprep.subr.mxu0 0.0
    %214 = vmatpush1.msra.mxu0 0.0
    %215 = vmatprep.subr.mxu0 0.0
    %216 = vmatpush1.msra.mxu0 0.0
    %217 = vmatprep.subr.mxu0 0.0
    %218 = vmatpush1.msra.mxu0 0.0
    %219 = vmatprep.mubr.f32.mxu0 0.0
    %220 = vmatmul.mubr.f32.gmra.mrb[0].mxu0 %v42
    %v221 = vpop.f32.mrb[0].mxu0
    %v222 = vadd.f32 0.0, %v221
    %v223 = vpop.f32.mrb[0].mxu0
    %224 = vmatprep.mubr.f32.mxu0 0.0
    %225 = vmatmul.mubr.f32.gmra.mrb[0].mxu0 %v45
    %v226 = vpop.f32.mrb[0].mxu0
    %v227 = vadd.f32 0.0, %v226
    %v228 = vpop.f32.mrb[0].mxu0
    %229 = vmatprep.mubr.f32.mxu0 0.0
    %230 = vmatmul.mubr.f32.gmra.mrb[0].mxu0 %v48
    %v231 = vpop.f32.mrb[0].mxu0
    %v232 = vadd.f32 0.0, %v231
    %v233 = vpop.f32.mrb[0].mxu0
    %234 = vmatprep.mubr.f32.mxu0 0.0
    %235 = vmatmul.mubr.f32.gmra.mrb[0].mxu0 %v51
    %v236 = vpop.f32.mrb[0].mxu0
    %v237 = vadd.f32 0.0, %v236
    %v238 = vpop.f32.mrb[0].mxu0
    %239 = vmatprep.mubr.f32.mxu0 0.0
    %240 = vmatmul.mubr.f32.gmra.mrb[0].mxu0 %v144
    %v241 = vpop.f32.mrb[0].mxu0
    %v242 = vadd.f32 0.0, %v241
    %v243 = vpop.f32.mrb[0].mxu0
    %244 = vmatprep.mubr.f32.mxu0 0.0
    %245 = vmatmul.mubr.f32.gmra.mrb[0].mxu0 %v147
    %v246 = vpop.f32.mrb[0].mxu0
    %v247 = vadd.f32 0.0, %v246
    %v248 = vpop.f32.mrb[0].mxu0
    %249 = vmatprep.mubr.f32.mxu0 0.0
    %250 = vmatmul.mubr.f32.gmra.mrb[0].mxu0 %v150
    %v251 = vpop.f32.mrb[0].mxu0
    %v252 = vadd.f32 0.0, %v251
    %v253 = vpop.f32.mrb[0].mxu0
    %254 = vmatprep.mubr.f32.mxu0 0.0
    %255 = vmatmul.mubr.f32.gmra.mrb[0].mxu0 %v153
    %v256 = vpop.f32.mrb[0].mxu0
    %v257 = vadd.f32 0.0, %v256
    %v258 = vpop.f32.mrb[0].mxu0
    %259 = vdwg.mxu0
    %v260 = vtanh.pop %v222
    %v261 = vtanh.pop %v227
    %v262 = vtanh.pop %v232
    %v263 = vtanh.pop %v237
    %v264 = vtanh.pop %v242
    %v265 = vtanh.pop %v247
    %v266 = vtanh.pop %v252
    %v267 = vtanh.pop %v257
    %v268 = vld [vmem:[%s3] sm:$0xff]
    %v269 = vld [vmem:[%s3 + $0x8] sm:$0xff]
    %v270 = vld [vmem:[%s5] sm:$0x1]
    %v272 = vlaneseq
    %v273 = vshrl.u32 %v272, 7
    %v274 = vsub.s32 0, %v273
    %v275 = vrot.slane %v270, %v274
    %vm277 = vcmask 130048
    %v279 = vsel %vm277, %v138, 0
    %v282 = vsel %vm277, %v139, 0
    %v285 = vsel %vm277, %v140, 0
    %v288 = vsel %vm277, %v141, 0
    %290 = vmatprep.subr.mxu0 0.0
    %291 = vmatpush1.msra.mxu0 %v268
    %292 = vmatprep.subr.mxu0 0.0
    %293 = vmatpush1.msra.mxu0 %v269
    %294 = vmatprep.subr.mxu0 0.0
    %295 = vmatpush1.msra.mxu0 0.0
    %296 = vmatprep.subr.mxu0 0.0
    %297 = vmatpush1.msra.mxu0 0.0
    %298 = vmatprep.subr.mxu0 0.0
    %299 = vmatpush1.msra.mxu0 0.0
    %300 = vmatprep.subr.mxu0 0.0
    %301 = vmatpush1.msra.mxu0 0.0
    %302 = vmatprep.subr.mxu0 0.0
    %303 = vmatpush1.msra.mxu0 0.0
    %304 = vmatprep.subr.mxu0 0.0
    %305 = vmatpush1.msra.mxu0 0.0
    %306 = vmatprep.subr.mxu0 0.0
    %307 = vmatpush1.msra.mxu0 0.0
    %308 = vmatprep.subr.mxu0 0.0
    %309 = vmatpush1.msra.mxu0 0.0
    %310 = vmatprep.subr.mxu0 0.0
    %311 = vmatpush1.msra.mxu0 0.0
    %312 = vmatprep.subr.mxu0 0.0
    %313 = vmatpush1.msra.mxu0 0.0
    %314 = vmatprep.subr.mxu0 0.0
    %315 = vmatpush1.msra.mxu0 0.0
    %316 = vmatprep.subr.mxu0 0.0
    %317 = vmatpush1.msra.mxu0 0.0
    %318 = vmatprep.subr.mxu0 0.0
    %319 = vmatpush1.msra.mxu0 0.0
    %320 = vmatprep.subr.mxu0 0.0
    %321 = vmatpush1.msra.mxu0 0.0
    %322 = vmatprep.subr.mxu0 0.0
    %323 = vmatpush1.msra.mxu0 0.0
    %324 = vmatprep.subr.mxu0 0.0
    %325 = vmatpush1.msra.mxu0 0.0
    %326 = vmatprep.subr.mxu0 0.0
    %327 = vmatpush1.msra.mxu0 0.0
    %328 = vmatprep.subr.mxu0 0.0
    %329 = vmatpush1.msra.mxu0 0.0
    %330 = vmatprep.subr.mxu0 0.0
    %331 = vmatpush1.msra.mxu0 0.0
    %332 = vmatprep.subr.mxu0 0.0
    %333 = vmatpush1.msra.mxu0 0.0
    %334 = vmatprep.subr.mxu0 0.0
    %335 = vmatpush1.msra.mxu0 0.0
    %336 = vmatprep.subr.mxu0 0.0
    %337 = vmatpush1.msra.mxu0 0.0
    %338 = vmatprep.subr.mxu0 0.0
    %339 = vmatpush1.msra.mxu0 0.0
    %340 = vmatprep.subr.mxu0 0.0
    %341 = vmatpush1.msra.mxu0 0.0
    %342 = vmatprep.subr.mxu0 0.0
    %343 = vmatpush1.msra.mxu0 0.0
    %344 = vmatprep.subr.mxu0 0.0
    %345 = vmatpush1.msra.mxu0 0.0
    %346 = vmatprep.subr.mxu0 0.0
    %347 = vmatpush1.msra.mxu0 0.0
    %348 = vmatprep.subr.mxu0 0.0
    %349 = vmatpush1.msra.mxu0 0.0
    %350 = vmatprep.subr.mxu0 0.0
    %351 = vmatpush1.msra.mxu0 0.0
    %352 = vmatprep.subr.mxu0 0.0
    %353 = vmatpush1.msra.mxu0 0.0
    %354 = vmatprep.mubr.f32.mxu0 0.0
    %355 = vmatmul.mubr.f32.gmra.mrb[0].mxu0 %v279
    %v356 = vpop.f32.mrb[0].mxu0
    %v357 = vadd.f32 %v275, %v356
    %v358 = vpop.f32.mrb[0].mxu0
    %359 = vmatprep.mubr.f32.mxu0 0.0
    %360 = vmatmul.mubr.f32.gmra.mrb[0].mxu0 %v282
    %v361 = vpop.f32.mrb[0].mxu0
    %v362 = vadd.f32 %v275, %v361
    %v363 = vpop.f32.mrb[0].mxu0
    %364 = vmatprep.mubr.f32.mxu0 0.0
    %365 = vmatmul.mubr.f32.gmra.mrb[0].mxu0 %v285
    %v366 = vpop.f32.mrb[0].mxu0
    %v367 = vadd.f32 %v275, %v366
    %v368 = vpop.f32.mrb[0].mxu0
    %369 = vmatprep.mubr.f32.mxu0 0.0
    %370 = vmatmul.mubr.f32.gmra.mrb[0].mxu0 %v288
    %v371 = vpop.f32.mrb[0].mxu0
    %v372 = vadd.f32 %v275, %v371
    %v373 = vpop.f32.mrb[0].mxu0
    %374 = vdwg.mxu0
    %v375 = vld [vmem:[%s4] sm:$0xff]
    %v376 = vld [vmem:[%s4 + $0x8] sm:$0xff]
    %v378 = vsel %vm277, %v260, 0
    %v381 = vsel %vm277, %v261, 0
    %v384 = vsel %vm277, %v262, 0
    %v387 = vsel %vm277, %v263, 0
    %v390 = vsel %vm277, %v264, 0
    %v393 = vsel %vm277, %v265, 0
    %v396 = vsel %vm277, %v266, 0
    %v399 = vsel %vm277, %v267, 0
    %401 = vmatprep.subr.mxu0 0.0
    %402 = vmatpush1.msra.mxu0 %v375
    %403 = vmatprep.subr.mxu0 0.0
    %404 = vmatpush1.msra.mxu0 %v376
    %405 = vmatprep.subr.mxu0 0.0
    %406 = vmatpush1.msra.mxu0 0.0
    %407 = vmatprep.subr.mxu0 0.0
    %408 = vmatpush1.msra.mxu0 0.0
    %409 = vmatprep.subr.mxu0 0.0
    %410 = vmatpush1.msra.mxu0 0.0
    %411 = vmatprep.subr.mxu0 0.0
    %412 = vmatpush1.msra.mxu0 0.0
    %413 = vmatprep.subr.mxu0 0.0
    %414 = vmatpush1.msra.mxu0 0.0
    %415 = vmatprep.subr.mxu0 0.0
    %416 = vmatpush1.msra.mxu0 0.0
    %417 = vmatprep.subr.mxu0 0.0
    %418 = vmatpush1.msra.mxu0 0.0
    %419 = vmatprep.subr.mxu0 0.0
    %420 = vmatpush1.msra.mxu0 0.0
    %421 = vmatprep.subr.mxu0 0.0
    %422 = vmatpush1.msra.mxu0 0.0
    %423 = vmatprep.subr.mxu0 0.0
    %424 = vmatpush1.msra.mxu0 0.0
    %425 = vmatprep.subr.mxu0 0.0
    %426 = vmatpush1.msra.mxu0 0.0
    %427 = vmatprep.subr.mxu0 0.0
    %428 = vmatpush1.msra.mxu0 0.0
    %429 = vmatprep.subr.mxu0 0.0
    %430 = vmatpush1.msra.mxu0 0.0
    %431 = vmatprep.subr.mxu0 0.0
    %432 = vmatpush1.msra.mxu0 0.0
    %433 = vmatprep.subr.mxu0 0.0
    %434 = vmatpush1.msra.mxu0 0.0
    %435 = vmatprep.subr.mxu0 0.0
    %436 = vmatpush1.msra.mxu0 0.0
    %437 = vmatprep.subr.mxu0 0.0
    %438 = vmatpush1.msra.mxu0 0.0
    %439 = vmatprep.subr.mxu0 0.0
    %440 = vmatpush1.msra.mxu0 0.0
    %441 = vmatprep.subr.mxu0 0.0
    %442 = vmatpush1.msra.mxu0 0.0
    %443 = vmatprep.subr.mxu0 0.0
    %444 = vmatpush1.msra.mxu0 0.0
    %445 = vmatprep.subr.mxu0 0.0
    %446 = vmatpush1.msra.mxu0 0.0
    %447 = vmatprep.subr.mxu0 0.0
    %448 = vmatpush1.msra.mxu0 0.0
    %449 = vmatprep.subr.mxu0 0.0
    %450 = vmatpush1.msra.mxu0 0.0
    %451 = vmatprep.subr.mxu0 0.0
    %452 = vmatpush1.msra.mxu0 0.0
    %453 = vmatprep.subr.mxu0 0.0
    %454 = vmatpush1.msra.mxu0 0.0
    %455 = vmatprep.subr.mxu0 0.0
    %456 = vmatpush1.msra.mxu0 0.0
    %457 = vmatprep.subr.mxu0 0.0
    %458 = vmatpush1.msra.mxu0 0.0
    %459 = vmatprep.subr.mxu0 0.0
    %460 = vmatpush1.msra.mxu0 0.0
    %461 = vmatprep.subr.mxu0 0.0
    %462 = vmatpush1.msra.mxu0 0.0
    %463 = vmatprep.subr.mxu0 0.0
    %464 = vmatpush1.msra.mxu0 0.0
    %465 = vmatprep.mubr.f32.mxu0 0.0
    %466 = vmatmul.mubr.f32.gmra.mrb[0].mxu0 %v378
    %v467 = vpop.f32.mrb[0].mxu0
    %v468 = vadd.f32 0.0, %v467
    %v469 = vpop.f32.mrb[0].mxu0
    %470 = vmatprep.mubr.f32.mxu0 0.0
    %471 = vmatmul.mubr.f32.gmra.mrb[0].mxu0 %v381
    %v472 = vpop.f32.mrb[0].mxu0
    %v473 = vadd.f32 0.0, %v472
    %v474 = vpop.f32.mrb[0].mxu0
    %475 = vmatprep.mubr.f32.mxu0 0.0
    %476 = vmatmul.mubr.f32.gmra.mrb[0].mxu0 %v384
    %v477 = vpop.f32.mrb[0].mxu0
    %v478 = vadd.f32 0.0, %v477
    %v479 = vpop.f32.mrb[0].mxu0
    %480 = vmatprep.mubr.f32.mxu0 0.0
    %481 = vmatmul.mubr.f32.gmra.mrb[0].mxu0 %v387
    %v482 = vpop.f32.mrb[0].mxu0
    %v483 = vadd.f32 0.0, %v482
    %v484 = vpop.f32.mrb[0].mxu0
    %485 = vmatprep.mubr.f32.mxu0 0.0
    %486 = vmatmul.mubr.f32.gmra.mrb[0].mxu0 %v390
    %v487 = vpop.f32.mrb[0].mxu0
    %v488 = vadd.f32 0.0, %v487
    %v489 = vpop.f32.mrb[0].mxu0
    %490 = vmatprep.mubr.f32.mxu0 0.0
    %491 = vmatmul.mubr.f32.gmra.mrb[0].mxu0 %v393
    %v492 = vpop.f32.mrb[0].mxu0
    %v493 = vadd.f32 0.0, %v492
    %v494 = vpop.f32.mrb[0].mxu0
    %495 = vmatprep.mubr.f32.mxu0 0.0
    %496 = vmatmul.mubr.f32.gmra.mrb[0].mxu0 %v396
    %v497 = vpop.f32.mrb[0].mxu0
    %v498 = vadd.f32 0.0, %v497
    %v499 = vpop.f32.mrb[0].mxu0
    %500 = vmatprep.mubr.f32.mxu0 0.0
    %501 = vmatmul.mubr.f32.gmra.mrb[0].mxu0 %v399
    %v502 = vpop.f32.mrb[0].mxu0
    %v503 = vadd.f32 0.0, %v502
    %v504 = vpop.f32.mrb[0].mxu0
    %505 = vdwg.mxu0
    %v506 = vadd.f32 %v468, %v357
    %v507 = vadd.f32 %v473, %v362
    %v508 = vadd.f32 %v478, %v367
    %v509 = vadd.f32 %v483, %v372
    %v510 = vadd.f32 %v488, %v357
    %v511 = vadd.f32 %v493, %v362
    %v512 = vadd.f32 %v498, %v367
    %v513 = vadd.f32 %v503, %v372
    %v514 = vmax.f32 %v506, 0.0
    %v515 = vmax.f32 %v507, 0.0
    %v516 = vmax.f32 %v508, 0.0
    %v517 = vmax.f32 %v509, 0.0
    %v518 = vmax.f32 %v510, 0.0
    %v519 = vmax.f32 %v511, 0.0
    %v520 = vmax.f32 %v512, 0.0
    %v521 = vmax.f32 %v513, 0.0
    %v522 = vld [vmem:[%s6] sm:$0x1]
    %v524 = vlaneseq
    %v525 = vshrl.u32 %v524, 7
    %v526 = vsub.s32 0, %v525
    %v527 = vrot.slane %v522, %v526
    %v529 = vmul.f32 %v514, %v527
    %v530 = vmul.f32 %v515, %v527
    %v531 = vmul.f32 %v516, %v527
    %v532 = vmul.f32 %v517, %v527
    %v533 = vmul.f32 %v518, %v527
    %v534 = vmul.f32 %v519, %v527
    %v535 = vmul.f32 %v520, %v527
    %v536 = vmul.f32 %v521, %v527
    %v537 = vsel %vm40, %v529, 0.0
    %538 = vadd.xlane.f32.xlu0 %v537
    %v539 = vpop.xlane.xlu0 %538
    %v540 = vsel %vm40, %v530, 0.0
    %541 = vadd.xlane.f32.xlu0 %v540
    %v542 = vpop.xlane.xlu0 %541
    %v543 = vsel %vm40, %v531, 0.0
    %544 = vadd.xlane.f32.xlu0 %v543
    %v545 = vpop.xlane.xlu0 %544
    %v546 = vsel %vm40, %v532, 0.0
    %547 = vadd.xlane.f32.xlu0 %v546
    %v548 = vpop.xlane.xlu0 %547
    %v549 = vsel %vm40, %v533, 0.0
    %550 = vadd.xlane.f32.xlu0 %v549
    %v551 = vpop.xlane.xlu0 %550
    %v552 = vsel %vm40, %v534, 0.0
    %553 = vadd.xlane.f32.xlu0 %v552
    %v554 = vpop.xlane.xlu0 %553
    %v555 = vsel %vm40, %v535, 0.0
    %556 = vadd.xlane.f32.xlu0 %v555
    %v557 = vpop.xlane.xlu0 %556
    %v558 = vsel %vm40, %v536, 0.0
    %559 = vadd.xlane.f32.xlu0 %v558
    %v560 = vpop.xlane.xlu0 %559
    %s561 = sld [smem:[#allocation2]]
    %v562 = vstv %s561
    %v563 = vadd.f32 %v539, %v562
    %v564 = vadd.f32 %v542, %v562
    %v565 = vadd.f32 %v545, %v562
    %v566 = vadd.f32 %v548, %v562
    %v567 = vadd.f32 %v551, %v562
    %v568 = vadd.f32 %v554, %v562
    %v569 = vadd.f32 %v557, %v562
    %v570 = vadd.f32 %v560, %v562
    %v571 = vxor.u32 %v563, 2147483648
    %v572 = vxor.u32 %v564, 2147483648
    %v573 = vxor.u32 %v565, 2147483648
    %v574 = vxor.u32 %v566, 2147483648
    %v575 = vxor.u32 %v567, 2147483648
    %v576 = vxor.u32 %v568, 2147483648
    %v577 = vxor.u32 %v569, 2147483648
    %v578 = vxor.u32 %v570, 2147483648
    %v579 = vmul.f32 %v571, 1.442695
    %v580 = vpow.pop %v579
    %v581 = vmul.f32 %v572, 1.442695
    %v582 = vpow.pop %v581
    %v583 = vmul.f32 %v573, 1.442695
    %v584 = vpow.pop %v583
    %v585 = vmul.f32 %v574, 1.442695
    %v586 = vpow.pop %v585
    %v587 = vmul.f32 %v575, 1.442695
    %v588 = vpow.pop %v587
    %v589 = vmul.f32 %v576, 1.442695
    %v590 = vpow.pop %v589
    %v591 = vmul.f32 %v577, 1.442695
    %v592 = vpow.pop %v591
    %v593 = vmul.f32 %v578, 1.442695
    %v594 = vpow.pop %v593
    %v595 = vadd.f32 %v580, 1.0
    %v596 = vadd.f32 %v582, 1.0
    %v597 = vadd.f32 %v584, 1.0
    %v598 = vadd.f32 %v586, 1.0
    %v599 = vadd.f32 %v588, 1.0
    %v600 = vadd.f32 %v590, 1.0
    %v601 = vadd.f32 %v592, 1.0
    %v602 = vadd.f32 %v594, 1.0
    %v603 = vrcp.pop %v595
    %v604 = vmul.f32 1.0, %v603
    %v605 = vrcp.pop %v596
    %v606 = vmul.f32 1.0, %v605
    %v607 = vrcp.pop %v597
    %v608 = vmul.f32 1.0, %v607
    %v609 = vrcp.pop %v598
    %v610 = vmul.f32 1.0, %v609
    %v611 = vrcp.pop %v599
    %v612 = vmul.f32 1.0, %v611
    %v613 = vrcp.pop %v600
    %v614 = vmul.f32 1.0, %v613
    %v615 = vrcp.pop %v601
    %v616 = vmul.f32 1.0, %v615
    %v617 = vrcp.pop %v602
    %v618 = vmul.f32 1.0, %v617
    %v619 = vsub.f32 %v604, %v612
    %v620 = vsub.f32 %v606, %v614
    %v621 = vsub.f32 %v608, %v616
    %v622 = vsub.f32 %v610, %v618
    %v623 = vmin.f32 %v619, 0.0
    %v624 = vmin.f32 %v620, 0.0
    %v625 = vmin.f32 %v621, 0.0
    %v626 = vmin.f32 %v622, 0.0
    %v627 = vmul.f32 %v623, %v623
    %v628 = vmul.f32 %v624, %v624
    %v629 = vmul.f32 %v625, %v625
    %v630 = vmul.f32 %v626, %v626
    %vm631 = vcmask 7168
    %v632 = vsel %vm631, %v627, 0.0
    %v633 = vsel %vm631, %v628, 0.0
    %v634 = vadd.f32 %v632, %v633
    %v635 = vsel %vm631, %v629, 0.0
    %v636 = vadd.f32 %v634, %v635
    %v637 = vsel %vm631, %v630, 0.0
    %v638 = vadd.f32 %v636, %v637
    %639 = vadd.xlane.f32.xlu0 %v638
    %v640 = vpop.xlane.xlu0 %639
    %v641 = vrot.slane %v640, 4
    %v642 = vadd.f32 %v640, %v641
    %v643 = vrot.slane %v642, 2
    %v644 = vadd.f32 %v642, %v643
    %v645 = vrot.slane %v644, 1
    %v646 = vadd.f32 %v644, %v645
    %s647 = vtos %v646
    %s648 = smul.f32 %s647, 0.03125
    %v649 = vsel %vm631, %v619, 0.0
    %v650 = vsel %vm631, %v620, 0.0
    %v651 = vadd.f32 %v649, %v650
    %v652 = vsel %vm631, %v621, 0.0
    %v653 = vadd.f32 %v651, %v652
    %v654 = vsel %vm631, %v622, 0.0
    %v655 = vadd.f32 %v653, %v654
    %656 = vadd.xlane.f32.xlu0 %v655
    %v657 = vpop.xlane.xlu0 %656
    %v658 = vrot.slane %v657, 4
    %v659 = vadd.f32 %v657, %v658
    %v660 = vrot.slane %v659, 2
    %v661 = vadd.f32 %v659, %v660
    %v662 = vrot.slane %v661, 1
    %v663 = vadd.f32 %v661, %v662
    %s664 = vtos %v663
    %s665 = smul.f32 %s664, 0.03125
    %s666 = sadd.f32 %s665, %s648
    %s667 = scalar_lea.smem [#allocation3], 0
    %668 = sst [smem:[%s667]] %s666
    // Predicated region
    $region34: #{calculate_mubo_pallas.1} parent=1 // pred_check
      _
    $region35: #{calculate_mubo_pallas.1} parent=1 // pred_check_branch
      %670 = sbr.rel (0) target = $region37
    $region36: #{calculate_mubo_pallas.1} parent=1 // pred_region
      %s672 = ssub.s32 16, 16
      %673 = vsyncadd [#allocation4], %s672
      %676 = dma.smem_to_hbm [#allocation3], 16, %s8, [#allocation4]
    $region37: #{calculate_mubo_pallas.1} parent=1 // pred_fallthru
      _
    // Predicated region
    $region38: #{calculate_mubo_pallas.1} parent=1 // pred_check
      _
    $region39: #{calculate_mubo_pallas.1} parent=1 // pred_check_branch
      %678 = sbr.rel (0) target = $region41
    $region40: #{calculate_mubo_pallas.1} parent=1 // pred_region
      %679 = dma.done [#allocation4], 16
    $region41: #{calculate_mubo_pallas.1} parent=1 // pred_fallthru
      _
    %680 = sfence
    %681 = vsyncpa [#allocation4], 1

</llo_original>
